<compile_context>
chip_gen: v6e
topology: v6e:2x2x1
jax: 0.10.0
libtpu: 0.0.40
codegen_flags: <defaults>
</compile_context>

<pallas_src>
import math
import functools

import jax
import jax.numpy as jnp
from jax.experimental import pallas as pl
from jax.experimental.pallas import tpu as pltpu


def _round_up(x, m):
    return (x + m - 1) // m * m


# ----------------------------- Pallas kernel -----------------------------

def _mha_kernel(q_ref, k_ref, v_ref, mask_ref,
                wq_ref, bq_ref, wk_ref, bk_ref, wv_ref, bv_ref, wo_ref, bo_ref,
                o_ref, *, bt, lq, lk):
    """One (batch-block, head) grid step.

    grid = (num_batch_blocks, heads); head axis is innermost ("arbitrary") and the per-head
    slice of the final linear is accumulated directly into o_ref (resident across heads).

    q_ref   : (bt*lq, D) bf16        k_ref/v_ref : (bt*lk, D) bf16
    mask_ref: (bt, mq, lk) bf16, 1.0 == masked key, 0.0 == attend (mq is 1 or lq)
    wq/wk/wv_ref : (D, dh) bf16      bq/bk/bv_ref : (1, dh) fp32
    wo_ref  : (dh, D) bf16           bo_ref : (1, D) fp32
    o_ref   : (bt*lq, D) fp32 accumulator
    """
    h = pl.program_id(1)

    # Per-head projections: full-D contraction on the MXU, fp32 accumulation.
    # (1/sqrt(dh) is folded into wq/bq by the wrapper, matching torch's post-projection scale.)
    q = jnp.dot(q_ref[...], wq_ref[...], preferred_element_type=jnp.float32) + bq_ref[...]
    k = jnp.dot(k_ref[...], wk_ref[...], preferred_element_type=jnp.float32) + bk_ref[...]
    v = jnp.dot(v_ref[...], wv_ref[...], preferred_element_type=jnp.float32) + bv_ref[...]

    dh = q.shape[-1]
    q3 = q.reshape(bt, lq, dh).astype(jnp.bfloat16)
    k3 = k.reshape(bt, lk, dh).astype(jnp.bfloat16)
    v3 = v.reshape(bt, lk, dh).astype(jnp.bfloat16)

    # Batched scores over the bt batch elements (no Python-unrolled loop, lane-aligned layout).
    s = jnp.einsum("bqd,bkd->bqk", q3, k3, preferred_element_type=jnp.float32)

    # Additive finite mask bias built in-kernel from the small (bt, mq, lk) 0/1 mask.
    # (Fully-masked rows become uniform attention instead of torch's NaN — documented divergence.)
    s = s + mask_ref[...].astype(jnp.float32) * jnp.float32(-1e30)

    # Softmax with deferred normalization: normalize the (lq, dh) context, not (lq, lk) probs.
    s = s - jnp.max(s, axis=-1, keepdims=True)
    p = jnp.exp(s)
    l = jnp.sum(p, axis=-1, keepdims=True)
    ctx = jnp.einsum("bqk,bkd->bqd", p.astype(jnp.bfloat16), v3,
                     preferred_element_type=jnp.float32)
    ctx = ctx * pl.reciprocal(l, approx=True)

    # Per-head slice of the final linear, accumulated into the fp32, lane-dense (D-wide) output.
    out_h = jnp.dot(ctx.reshape(bt * lq, dh).astype(jnp.bfloat16), wo_ref[...],
                    preferred_element_type=jnp.float32)

    @pl.when(h == 0)
    def _():
        o_ref[...] = out_h + bo_ref[...]

    @pl.when(h > 0)
    def _():
        o_ref[...] += out_h


# ----------------------------- wrapper -----------------------------

def multi_headed_attention(key_t, value_t, query_t, mask, params, *, heads, block_batch=None):
    """mask: [B, Lq, Lk] or [B, 1, Lk]; 1.0 == masked key (zero attention), 0.0 == attend."""
    B, Lk, D = key_t.shape
    Lq = query_t.shape[1]
    assert D % heads == 0
    dh = D // heads

    # Pad sequence lengths to sublane (8) multiples so flattened / reshaped blocks tile cleanly.
    Lqp = _round_up(Lq, 8)
    Lkp = _round_up(Lk, 8)

    # Raw 0/1 key mask kept at (B, mq, Lk); the -1e30 bias is built in-kernel (no Lq blow-up).
    if mask is None:
        mask_arr = jnp.zeros((B, 1, Lk), jnp.float32)
    else:
        mask_arr = mask.astype(jnp.float32)
        if mask_arr.ndim == 2:
            mask_arr = mask_arr[:, None, :]
        if mask_arr.shape[1] not in (1, Lq):
            mask_arr = jnp.broadcast_to(mask_arr, (B, Lq, Lk))
    mq = mask_arr.shape[1]

    # Batch-block size: target >=256 MXU rows (v6e/v7x), bounded by a VMEM budget that is safe
    # for v7x's 64 MiB VMEM, and keep >=2 batch grid steps so megacore ("parallel") can shard.
    if block_batch is None:
        per_b = (2 * (Lqp * D * 2 + 2 * Lkp * D * 2 + mq * Lkp * 2)       # double-buffered inputs
                 + 2 * Lqp * D * 4                                        # double-buffered output
                 + Lqp * Lkp * 12 + (Lqp + 2 * Lkp) * dh * 12 + Lqp * D * 4)  # live temporaries
        bt_m = max(1, 256 // Lqp)
        bt_v = max(1, (40 * 2 ** 20) // per_b)
        bt = max(1, min(B, bt_m, bt_v))
        if B >= 2:
            bt = min(bt, (B + 1) // 2)
    else:
        bt = max(1, min(block_batch, B))
    nb = (B + bt - 1) // bt
    Bp = nb * bt

    # Pad batch / sequences; padded keys are masked (1.0), padded rows are sliced off at the end.
    q_p = jnp.pad(query_t, ((0, Bp - B), (0, Lqp - Lq), (0, 0)))
    k_p = jnp.pad(key_t, ((0, Bp - B), (0, Lkp - Lk), (0, 0)))
    v_p = jnp.pad(value_t, ((0, Bp - B), (0, Lkp - Lk), (0, 0)))
    mask_p = jnp.pad(mask_arr,
                     ((0, Bp - B), (0, (Lqp - Lq) if mq > 1 else 0), (0, Lkp - Lk)),
                     constant_values=1.0)
    mqp = mask_p.shape[1]

    # bf16 activations (halves input DMA); batch rows flattened onto the MXU M axis.
    qf = q_p.reshape(Bp * Lqp, D).astype(jnp.bfloat16)
    kf = k_p.reshape(Bp * Lkp, D).astype(jnp.bfloat16)
    vf = v_p.reshape(Bp * Lkp, D).astype(jnp.bfloat16)
    maskb = mask_p.astype(jnp.bfloat16)

    # Head-sliced bf16 weights: per-head blocks are DMA'd by BlockSpec (no in-kernel lane
    # slicing / relayout).  1/sqrt(dh) folded into the query projection.
    inv = 1.0 / math.sqrt(dh)
    wq = (params["wq"] * inv).reshape(D, heads, dh).transpose(1, 0, 2).astype(jnp.bfloat16)
    wk = params["wk"].reshape(D, heads, dh).transpose(1, 0, 2).astype(jnp.bfloat16)
    wv = params["wv"].reshape(D, heads, dh).transpose(1, 0, 2).astype(jnp.bfloat16)
    wo = params["wo"].reshape(heads, dh, D).astype(jnp.bfloat16)
    bq = (params["bq"] * inv).reshape(1, heads, dh).transpose(1, 0, 2).astype(jnp.float32)
    bk = params["bk"].reshape(1, heads, dh).transpose(1, 0, 2).astype(jnp.float32)
    bv = params["bv"].reshape(1, heads, dh).transpose(1, 0, 2).astype(jnp.float32)
    bo = params["bo"].astype(jnp.float32)

    # Explicit, block-derived VMEM budget (generation-safe: capped at v7x's 64 MiB).
    in_bytes = (bt * Lqp * D * 2 + 2 * bt * Lkp * D * 2 + bt * mqp * Lkp * 2
                + 3 * (D * dh * 2 + dh * 4) + dh * D * 2 + D * 4)
    out_bytes = bt * Lqp * D * 4
    interm = bt * (Lqp * Lkp * 12 + (Lqp + 2 * Lkp) * dh * 12 + Lqp * D * 4)
    vmem_limit = int(min(64 * 2 ** 20,
                         max(16 * 2 ** 20, 2 * (in_bytes + out_bytes) + interm + (1 << 20))))

    flops = (2 * Bp * D * D * (Lqp + 2 * Lkp)       # q/k/v projections
             + 4 * Bp * Lqp * Lkp * D               # scores + PV
             + 2 * Bp * Lqp * D * D)                # final linear
    transcendentals = Bp * heads * Lqp * (Lkp + 1)
    bytes_accessed = (2 * Bp * (Lqp + 2 * Lkp) * D + 2 * Bp * mqp * Lkp
                      + nb * 4 * D * D * 2 + 4 * Bp * Lqp * D)

    out_flat = pl.pallas_call(
        functools.partial(_mha_kernel, bt=bt, lq=Lqp, lk=Lkp),
        grid=(nb, heads),
        in_specs=[
            pl.BlockSpec((bt * Lqp, D), lambda b, h: (b, 0)),        # query  (flattened, bf16)
            pl.BlockSpec((bt * Lkp, D), lambda b, h: (b, 0)),        # key    (flattened, bf16)
            pl.BlockSpec((bt * Lkp, D), lambda b, h: (b, 0)),        # value  (flattened, bf16)
            pl.BlockSpec((bt, mqp, Lkp), lambda b, h: (b, 0, 0)),    # 0/1 key mask
            pl.BlockSpec((None, D, dh), lambda b, h: (h, 0, 0)),     # wq[h]
            pl.BlockSpec((None, 1, dh), lambda b, h: (h, 0, 0)),     # bq[h]
            pl.BlockSpec((None, D, dh), lambda b, h: (h, 0, 0)),     # wk[h]
            pl.BlockSpec((None, 1, dh), lambda b, h: (h, 0, 0)),     # bk[h]
            pl.BlockSpec((None, D, dh), lambda b, h: (h, 0, 0)),     # wv[h]
            pl.BlockSpec((None, 1, dh), lambda b, h: (h, 0, 0)),     # bv[h]
            pl.BlockSpec((None, dh, D), lambda b, h: (h, 0, 0)),     # wo[h]
            pl.BlockSpec((1, D), lambda b, h: (0, 0)),               # bo
        ],
        out_specs=pl.BlockSpec((bt * Lqp, D), lambda b, h: (b, 0)),
        out_shape=jax.ShapeDtypeStruct((Bp * Lqp, D), jnp.float32),
        compiler_params=pltpu.CompilerParams(
            dimension_semantics=("parallel", "arbitrary"),
            vmem_limit_bytes=vmem_limit),
        cost_estimate=pl.CostEstimate(flops=flops, transcendentals=transcendentals,
                                      bytes_accessed=bytes_accessed),
    )(qf, kf, vf, maskb, wq, bq, wk, bk, wv, bv, wo, bo)

    return out_flat.reshape(Bp, Lqp, D)[:B, :Lq]


# ----------------------------- deterministic params -----------------------------

def init_params(key, d_model):
    def linear(k, din, dout):
        k1, k2 = jax.random.split(k)
        bound = 1.0 / math.sqrt(din)
        w = jax.random.uniform(k1, (din, dout), jnp.float32, -bound, bound)
        b = jax.random.uniform(k2, (1, dout), jnp.float32, -bound, bound)
        return w, b

    ks = jax.random.split(key, 4)
    wq, bq = linear(ks[0], d_model, d_model)
    wk, bk = linear(ks[1], d_model, d_model)
    wv, bv = linear(ks[2], d_model, d_model)
    wo, bo = linear(ks[3], d_model, d_model)
    return dict(wq=wq, bq=bq, wk=wk, bk=bk, wv=wv, bv=bv, wo=wo, bo=bo)


# ----------------------------- pure-JAX (torch-semantics) reference -----------------------------

def reference(key_t, value_t, query_t, mask, p, *, heads):
    B, Lk, D = key_t.shape
    Lq = query_t.shape[1]
    dh = D // heads
    k = key_t @ p["wk"] + p["bk"][0]
    v = value_t @ p["wv"] + p["bv"][0]
    q = query_t @ p["wq"] + p["bq"][0]
    sh = lambda t, L: t.reshape(B, L, heads, dh).transpose(0, 2, 1, 3)
    q = sh(q, Lq) / math.sqrt(dh)
    k = sh(k, Lk)
    v = sh(v, Lk)
    s = jnp.einsum("bhqd,bhkd->bhqk", q, k)
    if mask is not None:
        m = jnp.broadcast_to(mask, (B, Lq, Lk)).astype(bool)[:, None]
        s = jnp.where(m, -jnp.inf, s)
    attn = jax.nn.softmax(s, axis=-1)
    ctx = jnp.einsum("bhqk,bhkd->bhqd", attn, v).transpose(0, 2, 1, 3).reshape(B, Lq, D)
    return ctx @ p["wo"] + p["bo"][0]


# ----------------------------- main -----------------------------

if __name__ == "__main__":
    # NOTE: demo shapes (D=32, dh=8) underfill the 128-lane vreg; real workloads should use
    # D (and ideally dh) that are multiples of 128 — the kernel structure already supports it.
    B, LQ, LK, D, HEADS = 2, 8, 16, 32, 4

    key = jax.random.PRNGKey(0)
    kq, kk, kv, kp = jax.random.split(key, 4)
    query = jax.random.normal(kq, (B, LQ, D), jnp.float32)
    key_t = jax.random.normal(kk, (B, LK, D), jnp.float32)
    value = jax.random.normal(kv, (B, LK, D), jnp.float32)
    # mask: 1.0 == masked key; mask out the last 4 keys of batch element 1 for every query.
    mask = jnp.zeros((B, 1, LK), jnp.float32).at[1, 0, 12:].set(1.0)

    params = init_params(kp, D)

    out = multi_headed_attention(key_t, value, query, mask, params, heads=HEADS)
    out = jax.block_until_ready(out)

    ref = reference(key_t, value, query, mask, params, heads=HEADS)
    assert out.shape == (B, LQ, D)
    # bf16 MXU operands + approx reciprocal vs fp32 reference -> modest tolerance.
    assert jnp.allclose(out, ref, atol=5e-2, rtol=5e-2), float(jnp.max(jnp.abs(out - ref)))
    print("KERNEL_OK")
</pallas_src>

<mosaic_0001>
module attributes {stable_mosaic.version = 11 : i64} {
  func.func @_mha_kernel(%arg0: i32, %arg1: i32, %arg2: memref<8x32xbf16, #tpu.memory_space<vmem>>, %arg3: memref<16x32xbf16, #tpu.memory_space<vmem>>, %arg4: memref<16x32xbf16, #tpu.memory_space<vmem>>, %arg5: memref<1x1x16xbf16, #tpu.memory_space<vmem>>, %arg6: memref<1x32x8xbf16, #tpu.memory_space<vmem>>, %arg7: memref<1x1x8xf32, #tpu.memory_space<vmem>>, %arg8: memref<1x32x8xbf16, #tpu.memory_space<vmem>>, %arg9: memref<1x1x8xf32, #tpu.memory_space<vmem>>, %arg10: memref<1x32x8xbf16, #tpu.memory_space<vmem>>, %arg11: memref<1x1x8xf32, #tpu.memory_space<vmem>>, %arg12: memref<1x8x32xbf16, #tpu.memory_space<vmem>>, %arg13: memref<1x32xf32, #tpu.memory_space<vmem>>, %arg14: memref<8x32xf32, #tpu.memory_space<vmem>>) attributes {dimension_semantics = [#tpu.dimension_semantics<parallel>, #tpu.dimension_semantics<arbitrary>], iteration_bounds = array<i64: 2, 4>, scalar_prefetch = 0 : i64, scratch_operands = 0 : i64, tpu.core_type = #tpu.core_type<tc>, window_params = [{transform_indices = @transform_0, window_bounds = array<i64: 8, 32>}, {transform_indices = @transform_1, window_bounds = array<i64: 16, 32>}, {transform_indices = @transform_2, window_bounds = array<i64: 16, 32>}, {transform_indices = @transform_3, window_bounds = array<i64: 1, 1, 16>}, {transform_indices = @transform_4, window_bounds = array<i64: 1, 32, 8>}, {transform_indices = @transform_5, window_bounds = array<i64: 1, 1, 8>}, {transform_indices = @transform_6, window_bounds = array<i64: 1, 32, 8>}, {transform_indices = @transform_7, window_bounds = array<i64: 1, 1, 8>}, {transform_indices = @transform_8, window_bounds = array<i64: 1, 32, 8>}, {transform_indices = @transform_9, window_bounds = array<i64: 1, 1, 8>}, {transform_indices = @transform_10, window_bounds = array<i64: 1, 8, 32>}, {pipeline_mode = #tpu.pipeline_mode<synchronous>, transform_indices = @transform_11, window_bounds = array<i64: 1, 32>}, {transform_indices = @transform_12, window_bounds = array<i64: 8, 32>}]} {
    %c0 = arith.constant 0 : index
    %c0_0 = arith.constant 0 : index
    %0 = vector.load %arg2[%c0, %c0_0] : memref<8x32xbf16, #tpu.memory_space<vmem>>, vector<8x32xbf16>
    %c0_1 = arith.constant 0 : index
    %c0_2 = arith.constant 0 : index
    %c0_3 = arith.constant 0 : index
    %1 = vector.load %arg6[%c0_1, %c0_2, %c0_3] : memref<1x32x8xbf16, #tpu.memory_space<vmem>>, vector<1x32x8xbf16>
    %2 = vector.shape_cast %1 : vector<1x32x8xbf16> to vector<32x8xbf16>
    %cst = arith.constant dense<0.000000e+00> : vector<8x8xf32>
    %3 = tpu.matmul %0, %2, %cst {dimension_numbers = #tpu.dot_dimension_numbers<[1], [0], [0], [1], [0, 0, 1, 1], [], []>} : vector<8x32xbf16>, vector<32x8xbf16>, vector<8x8xf32> -> vector<8x8xf32>
    %c0_4 = arith.constant 0 : index
    %c0_5 = arith.constant 0 : index
    %c0_6 = arith.constant 0 : index
    %4 = vector.load %arg7[%c0_4, %c0_5, %c0_6] : memref<1x1x8xf32, #tpu.memory_space<vmem>>, vector<1x1x8xf32>
    %5 = vector.shape_cast %4 : vector<1x1x8xf32> to vector<1x8xf32>
    %6 = vector.broadcast %5 : vector<1x8xf32> to vector<8x8xf32>
    %7 = arith.addf %3, %6 : vector<8x8xf32>
    %c0_7 = arith.constant 0 : index
    %c0_8 = arith.constant 0 : index
    %8 = vector.load %arg3[%c0_7, %c0_8] : memref<16x32xbf16, #tpu.memory_space<vmem>>, vector<16x32xbf16>
    %c0_9 = arith.constant 0 : index
    %c0_10 = arith.constant 0 : index
    %c0_11 = arith.constant 0 : index
    %9 = vector.load %arg8[%c0_9, %c0_10, %c0_11] : memref<1x32x8xbf16, #tpu.memory_space<vmem>>, vector<1x32x8xbf16>
    %10 = vector.shape_cast %9 : vector<1x32x8xbf16> to vector<32x8xbf16>
    %cst_12 = arith.constant dense<0.000000e+00> : vector<16x8xf32>
    %11 = tpu.matmul %8, %10, %cst_12 {dimension_numbers = #tpu.dot_dimension_numbers<[1], [0], [0], [1], [0, 0, 1, 1], [], []>} : vector<16x32xbf16>, vector<32x8xbf16>, vector<16x8xf32> -> vector<16x8xf32>
    %c0_13 = arith.constant 0 : index
    %c0_14 = arith.constant 0 : index
    %c0_15 = arith.constant 0 : index
    %12 = vector.load %arg9[%c0_13, %c0_14, %c0_15] : memref<1x1x8xf32, #tpu.memory_space<vmem>>, vector<1x1x8xf32>
    %13 = vector.shape_cast %12 : vector<1x1x8xf32> to vector<1x8xf32>
    %14 = vector.broadcast %13 : vector<1x8xf32> to vector<16x8xf32>
    %15 = arith.addf %11, %14 : vector<16x8xf32>
    %c0_16 = arith.constant 0 : index
    %c0_17 = arith.constant 0 : index
    %16 = vector.load %arg4[%c0_16, %c0_17] : memref<16x32xbf16, #tpu.memory_space<vmem>>, vector<16x32xbf16>
    %c0_18 = arith.constant 0 : index
    %c0_19 = arith.constant 0 : index
    %c0_20 = arith.constant 0 : index
    %17 = vector.load %arg10[%c0_18, %c0_19, %c0_20] : memref<1x32x8xbf16, #tpu.memory_space<vmem>>, vector<1x32x8xbf16>
    %18 = vector.shape_cast %17 : vector<1x32x8xbf16> to vector<32x8xbf16>
    %cst_21 = arith.constant dense<0.000000e+00> : vector<16x8xf32>
    %19 = tpu.matmul %16, %18, %cst_21 {dimension_numbers = #tpu.dot_dimension_numbers<[1], [0], [0], [1], [0, 0, 1, 1], [], []>} : vector<16x32xbf16>, vector<32x8xbf16>, vector<16x8xf32> -> vector<16x8xf32>
    %c0_22 = arith.constant 0 : index
    %c0_23 = arith.constant 0 : index
    %c0_24 = arith.constant 0 : index
    %20 = vector.load %arg11[%c0_22, %c0_23, %c0_24] : memref<1x1x8xf32, #tpu.memory_space<vmem>>, vector<1x1x8xf32>
    %21 = vector.shape_cast %20 : vector<1x1x8xf32> to vector<1x8xf32>
    %22 = vector.broadcast %21 : vector<1x8xf32> to vector<16x8xf32>
    %23 = arith.addf %19, %22 : vector<16x8xf32>
    %24 = vector.shape_cast %7 : vector<8x8xf32> to vector<1x8x8xf32>
    %25 = arith.truncf %24 : vector<1x8x8xf32> to vector<1x8x8xbf16>
    %26 = vector.shape_cast %15 : vector<16x8xf32> to vector<1x16x8xf32>
    %27 = arith.truncf %26 : vector<1x16x8xf32> to vector<1x16x8xbf16>
    %28 = vector.shape_cast %23 : vector<16x8xf32> to vector<1x16x8xf32>
    %29 = arith.truncf %28 : vector<1x16x8xf32> to vector<1x16x8xbf16>
    "tpu.trace_start"() <{level = 10 : i32, message = "bqd,bkd->bqk"}> : () -> ()
    %cst_25 = arith.constant dense<0.000000e+00> : vector<1x8x16xf32>
    %30 = tpu.matmul %25, %27, %cst_25 {dimension_numbers = #tpu.dot_dimension_numbers<[2], [2], [1], [1], [0, 0, 0, 1, 1, 1], [0], [0]>} : vector<1x8x8xbf16>, vector<1x16x8xbf16>, vector<1x8x16xf32> -> vector<1x8x16xf32>
    "tpu.trace_stop"() : () -> ()
    %c0_26 = arith.constant 0 : index
    %c0_27 = arith.constant 0 : index
    %c0_28 = arith.constant 0 : index
    %31 = vector.load %arg5[%c0_26, %c0_27, %c0_28] : memref<1x1x16xbf16, #tpu.memory_space<vmem>>, vector<1x1x16xbf16>
    %32 = arith.extf %31 : vector<1x1x16xbf16> to vector<1x1x16xf32>
    %cst_29 = arith.constant -1.000000e+30 : f32
    %33 = vector.broadcast %cst_29 : f32 to vector<1x1x16xf32>
    %34 = arith.mulf %32, %33 : vector<1x1x16xf32>
    %35 = vector.broadcast %34 : vector<1x1x16xf32> to vector<1x8x16xf32>
    %36 = arith.addf %30, %35 : vector<1x8x16xf32>
    %cst_30 = arith.constant dense<0xFF800000> : vector<1x8xf32>
    %37 = vector.multi_reduction <maximumf>, %36, %cst_30 [2] : vector<1x8x16xf32> to vector<1x8xf32>
    %38 = vector.shape_cast %37 : vector<1x8xf32> to vector<1x8x1xf32>
    %39 = vector.broadcast %38 : vector<1x8x1xf32> to vector<1x8x16xf32>
    %40 = arith.subf %36, %39 : vector<1x8x16xf32>
    %41 = math.exp %40 : vector<1x8x16xf32>
    %cst_31 = arith.constant dense<0.000000e+00> : vector<1x8xf32>
    %42 = vector.multi_reduction <add>, %41, %cst_31 [2] : vector<1x8x16xf32> to vector<1x8xf32>
    %43 = vector.shape_cast %42 : vector<1x8xf32> to vector<1x8x1xf32>
    %44 = arith.truncf %41 : vector<1x8x16xf32> to vector<1x8x16xbf16>
    "tpu.trace_start"() <{level = 10 : i32, message = "bqk,bkd->bqd"}> : () -> ()
    %cst_32 = arith.constant dense<0.000000e+00> : vector<1x8x8xf32>
    %45 = tpu.matmul %44, %29, %cst_32 {dimension_numbers = #tpu.dot_dimension_numbers<[2], [1], [1], [2], [0, 0, 0, 1, 1, 2], [0], [0]>} : vector<1x8x16xbf16>, vector<1x16x8xbf16>, vector<1x8x8xf32> -> vector<1x8x8xf32>
    "tpu.trace_stop"() : () -> ()
    %46 = tpu.reciprocal %43 {approx = true} : vector<1x8x1xf32> -> vector<1x8x1xf32>
    %47 = vector.broadcast %46 : vector<1x8x1xf32> to vector<1x8x8xf32>
    %48 = arith.mulf %45, %47 : vector<1x8x8xf32>
    %49 = vector.shape_cast %48 : vector<1x8x8xf32> to vector<8x8xf32>
    %50 = arith.truncf %49 : vector<8x8xf32> to vector<8x8xbf16>
    %c0_33 = arith.constant 0 : index
    %c0_34 = arith.constant 0 : index
    %c0_35 = arith.constant 0 : index
    %51 = vector.load %arg12[%c0_33, %c0_34, %c0_35] : memref<1x8x32xbf16, #tpu.memory_space<vmem>>, vector<1x8x32xbf16>
    %52 = vector.shape_cast %51 : vector<1x8x32xbf16> to vector<8x32xbf16>
    %cst_36 = arith.constant dense<0.000000e+00> : vector<8x32xf32>
    %53 = tpu.matmul %50, %52, %cst_36 {dimension_numbers = #tpu.dot_dimension_numbers<[1], [0], [0], [1], [0, 0, 1, 1], [], []>} : vector<8x8xbf16>, vector<8x32xbf16>, vector<8x32xf32> -> vector<8x32xf32>
    %c0_i32 = arith.constant 0 : i32
    %54 = arith.cmpi eq, %arg1, %c0_i32 : i32
    %55 = arith.extui %54 : i1 to i32
    %c0_i32_37 = arith.constant 0 : i32
    %56 = arith.cmpi ne, %55, %c0_i32_37 : i32
    scf.if %56 {
      %c0_40 = arith.constant 0 : index
      %c0_41 = arith.constant 0 : index
      %60 = vector.load %arg13[%c0_40, %c0_41] : memref<1x32xf32, #tpu.memory_space<vmem>>, vector<1x32xf32>
      %61 = vector.broadcast %60 : vector<1x32xf32> to vector<8x32xf32>
      %62 = arith.addf %53, %61 : vector<8x32xf32>
      %c0_42 = arith.constant 0 : index
      %c0_43 = arith.constant 0 : index
      %63 = vector.load %arg14[%c0_42, %c0_43] : memref<8x32xf32, #tpu.memory_space<vmem>>, vector<8x32xf32>
      tpu.vector_store %arg14[%c0_42, %c0_43], %62 {strides = array<i32>} : memref<8x32xf32, #tpu.memory_space<vmem>>, vector<8x32xf32>,
    } else {
    }
    %c0_i32_38 = arith.constant 0 : i32
    %57 = arith.cmpi sgt, %arg1, %c0_i32_38 : i32
    %58 = arith.extui %57 : i1 to i32
    %c0_i32_39 = arith.constant 0 : i32
    %59 = arith.cmpi ne, %58, %c0_i32_39 : i32
    scf.if %59 {
      %c0_40 = arith.constant 0 : index
      %c0_41 = arith.constant 0 : index
      %60 = vector.load %arg14[%c0_40, %c0_41] : memref<8x32xf32, #tpu.memory_space<vmem>>, vector<8x32xf32>
      %61 = arith.addf %60, %53 : vector<8x32xf32>
      %c0_42 = arith.constant 0 : index
      %c0_43 = arith.constant 0 : index
      %62 = vector.load %arg14[%c0_42, %c0_43] : memref<8x32xf32, #tpu.memory_space<vmem>>, vector<8x32xf32>
      tpu.vector_store %arg14[%c0_42, %c0_43], %61 {strides = array<i32>} : memref<8x32xf32, #tpu.memory_space<vmem>>, vector<8x32xf32>,
    } else {
    }
    return
  }
  func.func @transform_0(%arg0: i32, %arg1: i32) -> (i32, i32) {
    %c0_i32 = arith.constant 0 : i32
    %c0_i32_0 = arith.constant 0 : i32
    return %arg0, %c0_i32 : i32, i32
  }
  func.func @transform_1(%arg0: i32, %arg1: i32) -> (i32, i32) {
    %c0_i32 = arith.constant 0 : i32
    %c0_i32_0 = arith.constant 0 : i32
    return %arg0, %c0_i32 : i32, i32
  }
  func.func @transform_2(%arg0: i32, %arg1: i32) -> (i32, i32) {
    %c0_i32 = arith.constant 0 : i32
    %c0_i32_0 = arith.constant 0 : i32
    return %arg0, %c0_i32 : i32, i32
  }
  func.func @transform_3(%arg0: i32, %arg1: i32) -> (i32, i32, i32) {
    %c0_i32 = arith.constant 0 : i32
    %c0_i32_0 = arith.constant 0 : i32
    %c0_i32_1 = arith.constant 0 : i32
    return %arg0, %c0_i32, %c0_i32_0 : i32, i32, i32
  }
  func.func @transform_4(%arg0: i32, %arg1: i32) -> (i32, i32, i32) {
    %c0_i32 = arith.constant 0 : i32
    %c0_i32_0 = arith.constant 0 : i32
    %c0_i32_1 = arith.constant 0 : i32
    return %arg1, %c0_i32, %c0_i32_0 : i32, i32, i32
  }
  func.func @transform_5(%arg0: i32, %arg1: i32) -> (i32, i32, i32) {
    %c0_i32 = arith.constant 0 : i32
    %c0_i32_0 = arith.constant 0 : i32
    %c0_i32_1 = arith.constant 0 : i32
    return %arg1, %c0_i32, %c0_i32_0 : i32, i32, i32
  }
  func.func @transform_6(%arg0: i32, %arg1: i32) -> (i32, i32, i32) {
    %c0_i32 = arith.constant 0 : i32
    %c0_i32_0 = arith.constant 0 : i32
    %c0_i32_1 = arith.constant 0 : i32
    return %arg1, %c0_i32, %c0_i32_0 : i32, i32, i32
  }
  func.func @transform_7(%arg0: i32, %arg1: i32) -> (i32, i32, i32) {
    %c0_i32 = arith.constant 0 : i32
    %c0_i32_0 = arith.constant 0 : i32
    %c0_i32_1 = arith.constant 0 : i32
    return %arg1, %c0_i32, %c0_i32_0 : i32, i32, i32
  }
  func.func @transform_8(%arg0: i32, %arg1: i32) -> (i32, i32, i32) {
    %c0_i32 = arith.constant 0 : i32
    %c0_i32_0 = arith.constant 0 : i32
    %c0_i32_1 = arith.constant 0 : i32
    return %arg1, %c0_i32, %c0_i32_0 : i32, i32, i32
  }
  func.func @transform_9(%arg0: i32, %arg1: i32) -> (i32, i32, i32) {
    %c0_i32 = arith.constant 0 : i32
    %c0_i32_0 = arith.constant 0 : i32
    %c0_i32_1 = arith.constant 0 : i32
    return %arg1, %c0_i32, %c0_i32_0 : i32, i32, i32
  }
  func.func @transform_10(%arg0: i32, %arg1: i32) -> (i32, i32, i32) {
    %c0_i32 = arith.constant 0 : i32
    %c0_i32_0 = arith.constant 0 : i32
    %c0_i32_1 = arith.constant 0 : i32
    return %arg1, %c0_i32, %c0_i32_0 : i32, i32, i32
  }
  func.func @transform_11(%arg0: i32, %arg1: i32) -> (i32, i32) {
    %c0_i32 = arith.constant 0 : i32
    %c0_i32_0 = arith.constant 0 : i32
    %c0_i32_1 = arith.constant 0 : i32
    return %c0_i32, %c0_i32_0 : i32, i32
  }
  func.func @transform_12(%arg0: i32, %arg1: i32) -> (i32, i32) {
    %c0_i32 = arith.constant 0 : i32
    %c0_i32_0 = arith.constant 0 : i32
    return %arg0, %c0_i32 : i32, i32
  }
}

</mosaic_0001>

<llo_original>
// kernel: tpu_custom_call.1
$region0: #{tpu_custom_call.1}
  #allocation0 [shape = 'u32[]', space=smem, size = 0x4, offset = 0x4, fixed_abs, tag = 'smem constant byte address 0x4 - core index']
  #allocation1 [shape = 'u32[144,128]{1,0:T(1,128)}', space=vmem, size = 0x12000, scoped, tag = 'internal scratch']
  %s0 = inlined_call_operand.vmem [shape: bf16[16,32], index: 0, kind: input, shape index: {}]
  %s1 = inlined_call_operand.vmem [shape: bf16[32,32], index: 1, kind: input, shape index: {}]
  %s2 = inlined_call_operand.vmem [shape: bf16[32,32], index: 2, kind: input, shape index: {}]
  %s3 = inlined_call_operand.vmem [shape: bf16[2,1,16], index: 3, kind: input, shape index: {}]
  %s4 = inlined_call_operand.vmem [shape: bf16[4,32,8], index: 4, kind: input, shape index: {}]
  %s5 = inlined_call_operand.vmem [shape: f32[4,1,8], index: 5, kind: input, shape index: {}]
  %s6 = inlined_call_operand.vmem [shape: bf16[4,32,8], index: 6, kind: input, shape index: {}]
  %s7 = inlined_call_operand.vmem [shape: f32[4,1,8], index: 7, kind: input, shape index: {}]
  %s8 = inlined_call_operand.vmem [shape: bf16[4,32,8], index: 8, kind: input, shape index: {}]
  %s9 = inlined_call_operand.vmem [shape: f32[4,1,8], index: 9, kind: input, shape index: {}]
  %s10 = inlined_call_operand.vmem [shape: bf16[4,8,32], index: 10, kind: input, shape index: {}]
  %s11 = inlined_call_operand.vmem [shape: f32[1,32], index: 11, kind: input, shape index: {}]
  %s12 = inlined_call_operand.hbm [shape: f32[16,32], index: 12, kind: output, shape index: {}]
  %s13 = sld [smem:[#allocation0]]
  $region89: #{tpu_custom_call.1} parent=0
    _
  %s15 = ssub.s32 1, %s13
  %s16 = scalar_select 0, %s15, %s13
  $region1: #{tpu_custom_call.1} parent=0
    #allocation2 [shape = 'u8[8192]{0}', space=vmem, size = 0x2000, scoped, tag = 'output window, operand 0']
    #allocation3 [shape = 's32[2]{0}', space=sflag, size = 0x8, scoped, tag = 'scoped memory for tpu_custom_call.1']
    %17 = vsyncpa [#allocation3], 0
    %s18 = scalar_lea.sflag [#allocation3], 1
    %19 = vsyncpa %s18, 0
    loop: start=0, step=1, limit=10
    $region2: #{tpu_custom_call.1} parent=1 // loop_pre_header
      _
    $region3: #{tpu_custom_call.1} parent=1 // loop_header
      %s21 = sphi 0, %s25
      %p22 = scmp.ge.s32.totalorder %s21, 10
      %s28 = sphi 0, %s40
      %s29 = sphi 0, %s36
      %s30 = sphi 0, %s28
      %s31 = sphi 0, %s29
      %s32 = sphi 0, %s30
      %s33 = sphi 0, %s31
      %s43 = sphi 0, %s45
      %s46 = sphi 0, %s43
      %s47 = sphi 0, %s46
      %s63 = sphi 0, %s47
      %s69 = sphi 0, %s71
      %s72 = sphi 0, %s69
      %s73 = sphi 0, %s72
      %s89 = sphi 0, %s73
      %s95 = sphi 0, %s97
      %s98 = sphi 0, %s95
      %s99 = sphi 0, %s98
      %s115 = sphi 0, %s99
      %s121 = sphi 0, %s123
      %s124 = sphi 0, %s121
      %s125 = sphi 0, %s124
      %s141 = sphi 0, %s125
      %s147 = sphi 0, %s149
      %s150 = sphi 0, %s147
      %s151 = sphi 0, %s150
      %s167 = sphi 0, %s151
      %s173 = sphi 0, %s175
      %s176 = sphi 0, %s173
      %s177 = sphi 0, %s176
      %s193 = sphi 0, %s177
      %s199 = sphi 0, %s201
      %s202 = sphi 0, %s199
      %s203 = sphi 0, %s202
      %s219 = sphi 0, %s203
      %s225 = sphi 0, %s227
      %s228 = sphi 0, %s225
      %s229 = sphi 0, %s228
      %s245 = sphi 0, %s229
      %s251 = sphi 0, %s253
      %s254 = sphi 0, %s251
      %s255 = sphi 0, %s254
      %s271 = sphi 0, %s255
      %s277 = sphi 0, %s279
      %s280 = sphi 0, %s277
      %s281 = sphi 0, %s280
      %s297 = sphi 0, %s281
      %s303 = sphi 0, %s305
      %s306 = sphi 0, %s303
      %s307 = sphi 0, %s306
      %s323 = sphi 0, %s307
      %s327 = sphi 0, %s327
      %s329 = sphi 0, %s327
      %s330 = sphi 0, %s329
      %s344 = sphi 0, %s330
      %s350 = sphi 0, %s352
      %s353 = sphi 0, %s350
      %s354 = sphi 0, %s353
      %s370 = sphi 0, %s354
    $region4: #{tpu_custom_call.1} parent=1 // loop_header_branch
      %24 = sbr.rel (%p22) target = $region8
    $region5: #{tpu_custom_call.1} parent=1 // loop_body
      %s26 = ssub.s32 %s21, 1
      %s27 = ssub.s32 %s21, 2
      %s34 = sadd.s32 1, %s29
      %p35 = scmp.ge.s32.totalorder %s34, 4
      %s36 = scalar_select %p35, 0, %s34
      %s37 = sadd.s32 1, %s28
      %s38 = scalar_select %p35, %s37, %s28
      %p39 = scmp.ge.s32.totalorder %s38, 2
      %s40 = scalar_select %p39, 0, %s38
      %s41 = ssub.s32 %s28, %s40
      %p42 = scmp.eq.s32.totalorder %s41, 0
      %s44 = sadd.s32 %s43, 1
      %s45 = scalar_select %p42, %s43, %s44
      %p48 = pneg %p42
      %p49 = scmp.eq.s32.totalorder %s21, 7
      %p50 = por %p48, %p49
      %p51 = scmp.ne.s32.totalorder %s43, %s46
      %p52 = scmp.eq.s32.totalorder %s21, 0
      %p53 = por %p51, %p52
      %p54 = scmp.ne.s32.totalorder %s43, %s46
      %p55 = scmp.eq.s32.totalorder %s26, 7
      %p56 = por %p54, %p55
      %p57 = scmp.ne.s32.totalorder %s46, %s47
      %p58 = scmp.eq.s32.totalorder %s26, 0
      %p59 = por %p57, %p58
      %p60 = scmp.ne.s32.totalorder %s46, %s47
      %p61 = scmp.eq.s32.totalorder %s27, 7
      %p62 = por %p60, %p61
      %p64 = scmp.ne.s32.totalorder %s47, %s63
      %p65 = scmp.eq.s32.totalorder %s27, 0
      %p66 = por %p64, %p65
      %s67 = ssub.s32 %s28, %s40
      %p68 = scmp.eq.s32.totalorder %s67, 0
      %s70 = sadd.s32 %s69, 1
      %s71 = scalar_select %p68, %s69, %s70
      %p74 = pneg %p68
      %p75 = scmp.eq.s32.totalorder %s21, 7
      %p76 = por %p74, %p75
      %p77 = scmp.ne.s32.totalorder %s69, %s72
      %p78 = scmp.eq.s32.totalorder %s21, 0
      %p79 = por %p77, %p78
      %p80 = scmp.ne.s32.totalorder %s69, %s72
      %p81 = scmp.eq.s32.totalorder %s26, 7
      %p82 = por %p80, %p81
      %p83 = scmp.ne.s32.totalorder %s72, %s73
      %p84 = scmp.eq.s32.totalorder %s26, 0
      %p85 = por %p83, %p84
      %p86 = scmp.ne.s32.totalorder %s72, %s73
      %p87 = scmp.eq.s32.totalorder %s27, 7
      %p88 = por %p86, %p87
      %p90 = scmp.ne.s32.totalorder %s73, %s89
      %p91 = scmp.eq.s32.totalorder %s27, 0
      %p92 = por %p90, %p91
      %s93 = ssub.s32 %s28, %s40
      %p94 = scmp.eq.s32.totalorder %s93, 0
      %s96 = sadd.s32 %s95, 1
      %s97 = scalar_select %p94, %s95, %s96
      %p100 = pneg %p94
      %p101 = scmp.eq.s32.totalorder %s21, 7
      %p102 = por %p100, %p101
      %p103 = scmp.ne.s32.totalorder %s95, %s98
      %p104 = scmp.eq.s32.totalorder %s21, 0
      %p105 = por %p103, %p104
      %p106 = scmp.ne.s32.totalorder %s95, %s98
      %p107 = scmp.eq.s32.totalorder %s26, 7
      %p108 = por %p106, %p107
      %p109 = scmp.ne.s32.totalorder %s98, %s99
      %p110 = scmp.eq.s32.totalorder %s26, 0
      %p111 = por %p109, %p110
      %p112 = scmp.ne.s32.totalorder %s98, %s99
      %p113 = scmp.eq.s32.totalorder %s27, 7
      %p114 = por %p112, %p113
      %p116 = scmp.ne.s32.totalorder %s99, %s115
      %p117 = scmp.eq.s32.totalorder %s27, 0
      %p118 = por %p116, %p117
      %s119 = ssub.s32 %s28, %s40
      %p120 = scmp.eq.s32.totalorder %s119, 0
      %s122 = sadd.s32 %s121, 1
      %s123 = scalar_select %p120, %s121, %s122
      %p126 = pneg %p120
      %p127 = scmp.eq.s32.totalorder %s21, 7
      %p128 = por %p126, %p127
      %p129 = scmp.ne.s32.totalorder %s121, %s124
      %p130 = scmp.eq.s32.totalorder %s21, 0
      %p131 = por %p129, %p130
      %p132 = scmp.ne.s32.totalorder %s121, %s124
      %p133 = scmp.eq.s32.totalorder %s26, 7
      %p134 = por %p132, %p133
      %p135 = scmp.ne.s32.totalorder %s124, %s125
      %p136 = scmp.eq.s32.totalorder %s26, 0
      %p137 = por %p135, %p136
      %p138 = scmp.ne.s32.totalorder %s124, %s125
      %p139 = scmp.eq.s32.totalorder %s27, 7
      %p140 = por %p138, %p139
      %p142 = scmp.ne.s32.totalorder %s125, %s141
      %p143 = scmp.eq.s32.totalorder %s27, 0
      %p144 = por %p142, %p143
      %s145 = ssub.s32 %s29, %s36
      %p146 = scmp.eq.s32.totalorder %s145, 0
      %s148 = sadd.s32 %s147, 1
      %s149 = scalar_select %p146, %s147, %s148
      %p152 = pneg %p146
      %p153 = scmp.eq.s32.totalorder %s21, 7
      %p154 = por %p152, %p153
      %p155 = scmp.ne.s32.totalorder %s147, %s150
      %p156 = scmp.eq.s32.totalorder %s21, 0
      %p157 = por %p155, %p156
      %p158 = scmp.ne.s32.totalorder %s147, %s150
      %p159 = scmp.eq.s32.totalorder %s26, 7
      %p160 = por %p158, %p159
      %p161 = scmp.ne.s32.totalorder %s150, %s151
      %p162 = scmp.eq.s32.totalorder %s26, 0
      %p163 = por %p161, %p162
      %p164 = scmp.ne.s32.totalorder %s150, %s151
      %p165 = scmp.eq.s32.totalorder %s27, 7
      %p166 = por %p164, %p165
      %p168 = scmp.ne.s32.totalorder %s151, %s167
      %p169 = scmp.eq.s32.totalorder %s27, 0
      %p170 = por %p168, %p169
      %s171 = ssub.s32 %s29, %s36
      %p172 = scmp.eq.s32.totalorder %s171, 0
      %s174 = sadd.s32 %s173, 1
      %s175 = scalar_select %p172, %s173, %s174
      %p178 = pneg %p172
      %p179 = scmp.eq.s32.totalorder %s21, 7
      %p180 = por %p178, %p179
      %p181 = scmp.ne.s32.totalorder %s173, %s176
      %p182 = scmp.eq.s32.totalorder %s21, 0
      %p183 = por %p181, %p182
      %p184 = scmp.ne.s32.totalorder %s173, %s176
      %p185 = scmp.eq.s32.totalorder %s26, 7
      %p186 = por %p184, %p185
      %p187 = scmp.ne.s32.totalorder %s176, %s177
      %p188 = scmp.eq.s32.totalorder %s26, 0
      %p189 = por %p187, %p188
      %p190 = scmp.ne.s32.totalorder %s176, %s177
      %p191 = scmp.eq.s32.totalorder %s27, 7
      %p192 = por %p190, %p191
      %p194 = scmp.ne.s32.totalorder %s177, %s193
      %p195 = scmp.eq.s32.totalorder %s27, 0
      %p196 = por %p194, %p195
      %s197 = ssub.s32 %s29, %s36
      %p198 = scmp.eq.s32.totalorder %s197, 0
      %s200 = sadd.s32 %s199, 1
      %s201 = scalar_select %p198, %s199, %s200
      %p204 = pneg %p198
      %p205 = scmp.eq.s32.totalorder %s21, 7
      %p206 = por %p204, %p205
      %p207 = scmp.ne.s32.totalorder %s199, %s202
      %p208 = scmp.eq.s32.totalorder %s21, 0
      %p209 = por %p207, %p208
      %p210 = scmp.ne.s32.totalorder %s199, %s202
      %p211 = scmp.eq.s32.totalorder %s26, 7
      %p212 = por %p210, %p211
      %p213 = scmp.ne.s32.totalorder %s202, %s203
      %p214 = scmp.eq.s32.totalorder %s26, 0
      %p215 = por %p213, %p214
      %p216 = scmp.ne.s32.totalorder %s202, %s203
      %p217 = scmp.eq.s32.totalorder %s27, 7
      %p218 = por %p216, %p217
      %p220 = scmp.ne.s32.totalorder %s203, %s219
      %p221 = scmp.eq.s32.totalorder %s27, 0
      %p222 = por %p220, %p221
      %s223 = ssub.s32 %s29, %s36
      %p224 = scmp.eq.s32.totalorder %s223, 0
      %s226 = sadd.s32 %s225, 1
      %s227 = scalar_select %p224, %s225, %s226
      %p230 = pneg %p224
      %p231 = scmp.eq.s32.totalorder %s21, 7
      %p232 = por %p230, %p231
      %p233 = scmp.ne.s32.totalorder %s225, %s228
      %p234 = scmp.eq.s32.totalorder %s21, 0
      %p235 = por %p233, %p234
      %p236 = scmp.ne.s32.totalorder %s225, %s228
      %p237 = scmp.eq.s32.totalorder %s26, 7
      %p238 = por %p236, %p237
      %p239 = scmp.ne.s32.totalorder %s228, %s229
      %p240 = scmp.eq.s32.totalorder %s26, 0
      %p241 = por %p239, %p240
      %p242 = scmp.ne.s32.totalorder %s228, %s229
      %p243 = scmp.eq.s32.totalorder %s27, 7
      %p244 = por %p242, %p243
      %p246 = scmp.ne.s32.totalorder %s229, %s245
      %p247 = scmp.eq.s32.totalorder %s27, 0
      %p248 = por %p246, %p247
      %s249 = ssub.s32 %s29, %s36
      %p250 = scmp.eq.s32.totalorder %s249, 0
      %s252 = sadd.s32 %s251, 1
      %s253 = scalar_select %p250, %s251, %s252
      %p256 = pneg %p250
      %p257 = scmp.eq.s32.totalorder %s21, 7
      %p258 = por %p256, %p257
      %p259 = scmp.ne.s32.totalorder %s251, %s254
      %p260 = scmp.eq.s32.totalorder %s21, 0
      %p261 = por %p259, %p260
      %p262 = scmp.ne.s32.totalorder %s251, %s254
      %p263 = scmp.eq.s32.totalorder %s26, 7
      %p264 = por %p262, %p263
      %p265 = scmp.ne.s32.totalorder %s254, %s255
      %p266 = scmp.eq.s32.totalorder %s26, 0
      %p267 = por %p265, %p266
      %p268 = scmp.ne.s32.totalorder %s254, %s255
      %p269 = scmp.eq.s32.totalorder %s27, 7
      %p270 = por %p268, %p269
      %p272 = scmp.ne.s32.totalorder %s255, %s271
      %p273 = scmp.eq.s32.totalorder %s27, 0
      %p274 = por %p272, %p273
      %s275 = ssub.s32 %s29, %s36
      %p276 = scmp.eq.s32.totalorder %s275, 0
      %s278 = sadd.s32 %s277, 1
      %s279 = scalar_select %p276, %s277, %s278
      %p282 = pneg %p276
      %p283 = scmp.eq.s32.totalorder %s21, 7
      %p284 = por %p282, %p283
      %p285 = scmp.ne.s32.totalorder %s277, %s280
      %p286 = scmp.eq.s32.totalorder %s21, 0
      %p287 = por %p285, %p286
      %p288 = scmp.ne.s32.totalorder %s277, %s280
      %p289 = scmp.eq.s32.totalorder %s26, 7
      %p290 = por %p288, %p289
      %p291 = scmp.ne.s32.totalorder %s280, %s281
      %p292 = scmp.eq.s32.totalorder %s26, 0
      %p293 = por %p291, %p292
      %p294 = scmp.ne.s32.totalorder %s280, %s281
      %p295 = scmp.eq.s32.totalorder %s27, 7
      %p296 = por %p294, %p295
      %p298 = scmp.ne.s32.totalorder %s281, %s297
      %p299 = scmp.eq.s32.totalorder %s27, 0
      %p300 = por %p298, %p299
      %s301 = ssub.s32 %s29, %s36
      %p302 = scmp.eq.s32.totalorder %s301, 0
      %s304 = sadd.s32 %s303, 1
      %s305 = scalar_select %p302, %s303, %s304
      %p308 = pneg %p302
      %p309 = scmp.eq.s32.totalorder %s21, 7
      %p310 = por %p308, %p309
      %p311 = scmp.ne.s32.totalorder %s303, %s306
      %p312 = scmp.eq.s32.totalorder %s21, 0
      %p313 = por %p311, %p312
      %p314 = scmp.ne.s32.totalorder %s303, %s306
      %p315 = scmp.eq.s32.totalorder %s26, 7
      %p316 = por %p314, %p315
      %p317 = scmp.ne.s32.totalorder %s306, %s307
      %p318 = scmp.eq.s32.totalorder %s26, 0
      %p319 = por %p317, %p318
      %p320 = scmp.ne.s32.totalorder %s306, %s307
      %p321 = scmp.eq.s32.totalorder %s27, 7
      %p322 = por %p320, %p321
      %p324 = scmp.ne.s32.totalorder %s307, %s323
      %p325 = scmp.eq.s32.totalorder %s27, 0
      %p326 = por %p324, %p325
      %s328 = sadd.s32 %s327, 1
      %p331 = scmp.eq.s32.totalorder %s21, 7
      %p332 = scmp.ne.s32.totalorder %s327, %s329
      %p333 = scmp.eq.s32.totalorder %s21, 0
      %p334 = por %p332, %p333
      %p335 = scmp.ne.s32.totalorder %s327, %s329
      %p336 = scmp.eq.s32.totalorder %s26, 7
      %p337 = por %p335, %p336
      %p338 = scmp.ne.s32.totalorder %s329, %s330
      %p339 = scmp.eq.s32.totalorder %s26, 0
      %p340 = por %p338, %p339
      %p341 = scmp.ne.s32.totalorder %s329, %s330
      %p342 = scmp.eq.s32.totalorder %s27, 7
      %p343 = por %p341, %p342
      %p345 = scmp.ne.s32.totalorder %s330, %s344
      %p346 = scmp.eq.s32.totalorder %s27, 0
      %p347 = por %p345, %p346
      %s348 = ssub.s32 %s28, %s40
      %p349 = scmp.eq.s32.totalorder %s348, 0
      %s351 = sadd.s32 %s350, 1
      %s352 = scalar_select %p349, %s350, %s351
      %p355 = pneg %p349
      %p356 = scmp.eq.s32.totalorder %s21, 7
      %p357 = por %p355, %p356
      %p358 = scmp.ne.s32.totalorder %s350, %s353
      %p359 = scmp.eq.s32.totalorder %s21, 0
      %p360 = por %p358, %p359
      %p361 = scmp.ne.s32.totalorder %s350, %s353
      %p362 = scmp.eq.s32.totalorder %s26, 7
      %p363 = por %p361, %p362
      %p364 = scmp.ne.s32.totalorder %s353, %s354
      %p365 = scmp.eq.s32.totalorder %s26, 0
      %p366 = por %p364, %p365
      %p367 = scmp.ne.s32.totalorder %s353, %s354
      %p368 = scmp.eq.s32.totalorder %s27, 7
      %p369 = por %p367, %p368
      %p371 = scmp.ne.s32.totalorder %s354, %s370
      %p372 = scmp.eq.s32.totalorder %s27, 0
      %p373 = por %p371, %p372
      %p374 = scmp.le.s32.totalorder 1, %s21
      %p375 = scmp.lt.s32.totalorder %s21, 9
      %p376 = pnand %p374, %p375
      %p377 = pneg %p376
      // Predicated region
      $region9: #{tpu_custom_call.1} parent=5 // pred_check
        _
      $region10: #{tpu_custom_call.1} parent=5 // pred_check_branch
        %379 = sbr.rel (%p376) target = $region12
      $region11: #{tpu_custom_call.1} parent=5 // pred_region
        %s380 = ssub.s32 %s21, 1
        // Predicated region
        $region13: #{tpu_custom_call.1} parent=11 // pred_check
          %p381 = pneg %p340
        $region14: #{tpu_custom_call.1} parent=11 // pred_check_branch
          %383 = sbr.rel (%p381) target = $region16
        $region15: #{tpu_custom_call.1} parent=11 // pred_region
          _
        $region16: #{tpu_custom_call.1} parent=11 // pred_fallthru
          _
      $region12: #{tpu_custom_call.1} parent=5 // pred_fallthru
        _
      %p384 = scmp.lt.s32.totalorder %s21, 8
      // Predicated region
      $region17: #{tpu_custom_call.1} parent=5 // pred_check
        %p385 = pneg %p384
      $region18: #{tpu_custom_call.1} parent=5 // pred_check_branch
        %387 = sbr.rel (%p385) target = $region20
      $region19: #{tpu_custom_call.1} parent=5 // pred_region
        // Predicated region
        $region21: #{tpu_custom_call.1} parent=19 // pred_check
          %p388 = pneg %p53
        $region22: #{tpu_custom_call.1} parent=19 // pred_check_branch
          %390 = sbr.rel (%p388) target = $region24
        $region23: #{tpu_custom_call.1} parent=19 // pred_region
          %p391 = scmp.lt.s32.totalorder %s28, 1
          %s392 = scalar_select %p391, %s28, 1
          %s393 = smul.addr %s392, 4
          %s394 = scalar_lea.vmem %s0, %s393
        $region24: #{tpu_custom_call.1} parent=19 // pred_fallthru
          _
        // Predicated region
        $region25: #{tpu_custom_call.1} parent=19 // pred_check
          %p395 = pneg %p79
        $region26: #{tpu_custom_call.1} parent=19 // pred_check_branch
          %397 = sbr.rel (%p395) target = $region28
        $region27: #{tpu_custom_call.1} parent=19 // pred_region
          %s398 = smul.u32 2, %s28
          %p399 = scmp.lt.s32.totalorder %s398, 3
          %s400 = scalar_select %p399, %s398, 3
          %s401 = smul.addr %s400, 4
          %s402 = scalar_lea.vmem %s1, %s401
          %s403 = smul.u32 2, %s28
        $region28: #{tpu_custom_call.1} parent=19 // pred_fallthru
          _
        // Predicated region
        $region29: #{tpu_custom_call.1} parent=19 // pred_check
          %p404 = pneg %p105
        $region30: #{tpu_custom_call.1} parent=19 // pred_check_branch
          %406 = sbr.rel (%p404) target = $region32
        $region31: #{tpu_custom_call.1} parent=19 // pred_region
          %s407 = smul.u32 2, %s28
          %p408 = scmp.lt.s32.totalorder %s407, 3
          %s409 = scalar_select %p408, %s407, 3
          %s410 = smul.addr %s409, 4
          %s411 = scalar_lea.vmem %s2, %s410
          %s412 = smul.u32 2, %s28
        $region32: #{tpu_custom_call.1} parent=19 // pred_fallthru
          _
        // Predicated region
        $region33: #{tpu_custom_call.1} parent=19 // pred_check
          %p413 = pneg %p131
        $region34: #{tpu_custom_call.1} parent=19 // pred_check_branch
          %415 = sbr.rel (%p413) target = $region36
        $region35: #{tpu_custom_call.1} parent=19 // pred_region
          %p416 = scmp.lt.s32.totalorder %s28, 1
          %s417 = scalar_select %p416, %s28, 1
          %s418 = scalar_lea.vmem %s3, %s417
        $region36: #{tpu_custom_call.1} parent=19 // pred_fallthru
          _
        // Predicated region
        $region37: #{tpu_custom_call.1} parent=19 // pred_check
          %p419 = pneg %p157
        $region38: #{tpu_custom_call.1} parent=19 // pred_check_branch
          %421 = sbr.rel (%p419) target = $region40
        $region39: #{tpu_custom_call.1} parent=19 // pred_region
          %p422 = scmp.lt.s32.totalorder %s29, 3
          %s423 = scalar_select %p422, %s29, 3
          %s424 = smul.addr %s423, 4
          %s425 = smul.addr %s424, 4
          %s426 = scalar_lea.vmem %s4, %s425
        $region40: #{tpu_custom_call.1} parent=19 // pred_fallthru
          _
        // Predicated region
        $region41: #{tpu_custom_call.1} parent=19 // pred_check
          %p427 = pneg %p183
        $region42: #{tpu_custom_call.1} parent=19 // pred_check_branch
          %429 = sbr.rel (%p427) target = $region44
        $region43: #{tpu_custom_call.1} parent=19 // pred_region
          %p430 = scmp.lt.s32.totalorder %s29, 3
          %s431 = scalar_select %p430, %s29, 3
          %s432 = scalar_lea.vmem %s5, %s431
        $region44: #{tpu_custom_call.1} parent=19 // pred_fallthru
          _
        // Predicated region
        $region45: #{tpu_custom_call.1} parent=19 // pred_check
          %p433 = pneg %p209
        $region46: #{tpu_custom_call.1} parent=19 // pred_check_branch
          %435 = sbr.rel (%p433) target = $region48
        $region47: #{tpu_custom_call.1} parent=19 // pred_region
          %p436 = scmp.lt.s32.totalorder %s29, 3
          %s437 = scalar_select %p436, %s29, 3
          %s438 = smul.addr %s437, 4
          %s439 = smul.addr %s438, 4
          %s440 = scalar_lea.vmem %s6, %s439
        $region48: #{tpu_custom_call.1} parent=19 // pred_fallthru
          _
        // Predicated region
        $region49: #{tpu_custom_call.1} parent=19 // pred_check
          %p441 = pneg %p235
        $region50: #{tpu_custom_call.1} parent=19 // pred_check_branch
          %443 = sbr.rel (%p441) target = $region52
        $region51: #{tpu_custom_call.1} parent=19 // pred_region
          %p444 = scmp.lt.s32.totalorder %s29, 3
          %s445 = scalar_select %p444, %s29, 3
          %s446 = scalar_lea.vmem %s7, %s445
        $region52: #{tpu_custom_call.1} parent=19 // pred_fallthru
          _
        // Predicated region
        $region53: #{tpu_custom_call.1} parent=19 // pred_check
          %p447 = pneg %p261
        $region54: #{tpu_custom_call.1} parent=19 // pred_check_branch
          %449 = sbr.rel (%p447) target = $region56
        $region55: #{tpu_custom_call.1} parent=19 // pred_region
          %p450 = scmp.lt.s32.totalorder %s29, 3
          %s451 = scalar_select %p450, %s29, 3
          %s452 = smul.addr %s451, 4
          %s453 = smul.addr %s452, 4
          %s454 = scalar_lea.vmem %s8, %s453
        $region56: #{tpu_custom_call.1} parent=19 // pred_fallthru
          _
        // Predicated region
        $region57: #{tpu_custom_call.1} parent=19 // pred_check
          %p455 = pneg %p287
        $region58: #{tpu_custom_call.1} parent=19 // pred_check_branch
          %457 = sbr.rel (%p455) target = $region60
        $region59: #{tpu_custom_call.1} parent=19 // pred_region
          %p458 = scmp.lt.s32.totalorder %s29, 3
          %s459 = scalar_select %p458, %s29, 3
          %s460 = scalar_lea.vmem %s9, %s459
        $region60: #{tpu_custom_call.1} parent=19 // pred_fallthru
          _
        // Predicated region
        $region61: #{tpu_custom_call.1} parent=19 // pred_check
          %p461 = pneg %p313
        $region62: #{tpu_custom_call.1} parent=19 // pred_check_branch
          %463 = sbr.rel (%p461) target = $region64
        $region63: #{tpu_custom_call.1} parent=19 // pred_region
          %p464 = scmp.lt.s32.totalorder %s29, 3
          %s465 = scalar_select %p464, %s29, 3
          %s466 = smul.addr %s465, 4
          %s467 = scalar_lea.vmem %s10, %s466
        $region64: #{tpu_custom_call.1} parent=19 // pred_fallthru
          _
      $region20: #{tpu_custom_call.1} parent=5 // pred_fallthru
        _
      %p468 = scmp.le.s32.totalorder 1, %s21
      %p469 = scmp.lt.s32.totalorder %s21, 9
      %p470 = pnand %p468, %p469
      %p471 = pneg %p470
      // Predicated region
      $region65: #{tpu_custom_call.1} parent=5 // pred_check
        _
      $region66: #{tpu_custom_call.1} parent=5 // pred_check_branch
        %473 = sbr.rel (%p470) target = $region68
      $region67: #{tpu_custom_call.1} parent=5 // pred_region
        %s474 = ssub.s32 %s21, 1
        %p475 = scmp.lt.s32.totalorder %s30, 1
        %s476 = scalar_select %p475, %s30, 1
        %s477 = smul.addr %s476, 4
        %s478 = scalar_lea.vmem %s0, %s477
        %p479 = pneg %p59
        %p480 = pneg %p56
        %s481 = smul.u32 2, %s30
        %p482 = scmp.lt.s32.totalorder %s481, 3
        %s483 = scalar_select %p482, %s481, 3
        %s484 = smul.addr %s483, 4
        %s485 = scalar_lea.vmem %s1, %s484
        %p486 = pneg %p85
        %p487 = pneg %p82
        %s488 = smul.u32 2, %s30
        %p489 = scmp.lt.s32.totalorder %s488, 3
        %s490 = scalar_select %p489, %s488, 3
        %s491 = smul.addr %s490, 4
        %s492 = scalar_lea.vmem %s2, %s491
        %p493 = pneg %p111
        %p494 = pneg %p108
        %p495 = scmp.lt.s32.totalorder %s30, 1
        %s496 = scalar_select %p495, %s30, 1
        %s497 = scalar_lea.vmem %s3, %s496
        %p498 = pneg %p137
        %p499 = pneg %p134
        %p500 = scmp.lt.s32.totalorder %s31, 3
        %s501 = scalar_select %p500, %s31, 3
        %s502 = smul.addr %s501, 4
        %s503 = smul.addr %s502, 4
        %s504 = scalar_lea.vmem %s4, %s503
        %p505 = pneg %p163
        %p506 = pneg %p160
        %p507 = scmp.lt.s32.totalorder %s31, 3
        %s508 = scalar_select %p507, %s31, 3
        %s509 = scalar_lea.vmem %s5, %s508
        %p510 = pneg %p189
        %p511 = pneg %p186
        %p512 = scmp.lt.s32.totalorder %s31, 3
        %s513 = scalar_select %p512, %s31, 3
        %s514 = smul.addr %s513, 4
        %s515 = smul.addr %s514, 4
        %s516 = scalar_lea.vmem %s6, %s515
        %p517 = pneg %p215
        %p518 = pneg %p212
        %p519 = scmp.lt.s32.totalorder %s31, 3
        %s520 = scalar_select %p519, %s31, 3
        %s521 = scalar_lea.vmem %s7, %s520
        %p522 = pneg %p241
        %p523 = pneg %p238
        %p524 = scmp.lt.s32.totalorder %s31, 3
        %s525 = scalar_select %p524, %s31, 3
        %s526 = smul.addr %s525, 4
        %s527 = smul.addr %s526, 4
        %s528 = scalar_lea.vmem %s8, %s527
        %p529 = pneg %p267
        %p530 = pneg %p264
        %p531 = scmp.lt.s32.totalorder %s31, 3
        %s532 = scalar_select %p531, %s31, 3
        %s533 = scalar_lea.vmem %s9, %s532
        %p534 = pneg %p293
        %p535 = pneg %p290
        %p536 = scmp.lt.s32.totalorder %s31, 3
        %s537 = scalar_select %p536, %s31, 3
        %s538 = smul.addr %s537, 4
        %s539 = scalar_lea.vmem %s10, %s538
        %p540 = pneg %p319
        %p541 = pneg %p316
        %p542 = pneg %p340
        %p543 = pneg %p337
        %p544 = pneg %p366
        %p545 = pneg %p363
        %s546 = sand.u32 %s353, 1
        %s547 = scalar_lea.sflag [#allocation3], %s546
        %s548 = sand.u32 %s353, 1
        %s549 = smul.addr %s548, 8
        %s550 = scalar_lea.vmem [#allocation2], %s549
        %p551 = scmp.lt.s32.totalorder %s30, 1
        %s552 = scalar_select %p551, %s30, 1
        %s553 = smul.addr %s552, 4
        %s554 = scalar_lea.vmem %s0, %s553
        %s555 = smul.u32 2, %s30
        %p556 = scmp.lt.s32.totalorder %s555, 3
        %s557 = scalar_select %p556, %s555, 3
        %s558 = smul.addr %s557, 4
        %s559 = scalar_lea.vmem %s1, %s558
        %s560 = smul.u32 2, %s30
        %s561 = smul.u32 2, %s30
        %p562 = scmp.lt.s32.totalorder %s561, 3
        %s563 = scalar_select %p562, %s561, 3
        %s564 = smul.addr %s563, 4
        %s565 = scalar_lea.vmem %s2, %s564
        %s566 = smul.u32 2, %s30
        %p567 = scmp.lt.s32.totalorder %s30, 1
        %s568 = scalar_select %p567, %s30, 1
        %s569 = scalar_lea.vmem %s3, %s568
        %p570 = scmp.lt.s32.totalorder %s31, 3
        %s571 = scalar_select %p570, %s31, 3
        %s572 = smul.addr %s571, 4
        %s573 = smul.addr %s572, 4
        %s574 = scalar_lea.vmem %s4, %s573
        %p575 = scmp.lt.s32.totalorder %s31, 3
        %s576 = scalar_select %p575, %s31, 3
        %s577 = scalar_lea.vmem %s5, %s576
        %p578 = scmp.lt.s32.totalorder %s31, 3
        %s579 = scalar_select %p578, %s31, 3
        %s580 = smul.addr %s579, 4
        %s581 = smul.addr %s580, 4
        %s582 = scalar_lea.vmem %s6, %s581
        %p583 = scmp.lt.s32.totalorder %s31, 3
        %s584 = scalar_select %p583, %s31, 3
        %s585 = scalar_lea.vmem %s7, %s584
        %p586 = scmp.lt.s32.totalorder %s31, 3
        %s587 = scalar_select %p586, %s31, 3
        %s588 = smul.addr %s587, 4
        %s589 = smul.addr %s588, 4
        %s590 = scalar_lea.vmem %s8, %s589
        %p591 = scmp.lt.s32.totalorder %s31, 3
        %s592 = scalar_select %p591, %s31, 3
        %s593 = scalar_lea.vmem %s9, %s592
        %p594 = scmp.lt.s32.totalorder %s31, 3
        %s595 = scalar_select %p594, %s31, 3
        %s596 = smul.addr %s595, 4
        %s597 = scalar_lea.vmem %s10, %s596
        %v599 = vld [vmem:[%s554] sm:$0xf]
        %v600 = vld [vmem:[%s574] sm:$0xf]
        %v601 = vld [vmem:[%s574 + $0x4] sm:$0xf]
        %v602 = vld [vmem:[%s574 + $0x8] sm:$0xf]
        %v603 = vld [vmem:[%s574 + $0xc] sm:$0xf]
        %v604 = vld [vmem:[%s577] sm:$0x1]
        %v606 = vlaneseq
        %v607 = vshrl.u32 %v606, 7
        %v608 = vsub.s32 0, %v607
        %v609 = vrot.slane %v604, %v608
        %v615 = vunpack.c.l.b16 %v600
        %v616 = vunpack.c.l.b16 %v601
        %v617 = vunpack.c.l.b16 %v602
        %v618 = vunpack.c.l.b16 %v603
        %v619 = vpack.c.b16 %v616, %v615
        %v620 = vpack.c.b16 %v618, %v617
        %vm623 = vcmask 261120
        %v625 = vsel %vm623, %v599, 0
        %627 = vmatprep.subr.bf16.mxu0 0
        %628 = vmatpush1.bf16.msra.mxu0 0
        %629 = vmatprep.subr.bf16.mxu0 0
        %630 = vmatpush1.bf16.msra.mxu0 0
        %631 = vmatprep.subr.bf16.mxu0 0
        %632 = vmatpush1.bf16.msra.mxu0 0
        %633 = vmatprep.subr.bf16.mxu0 0
        %634 = vmatpush1.bf16.msra.mxu0 0
        %635 = vmatprep.subr.bf16.mxu0 0
        %636 = vmatpush1.bf16.msra.mxu0 0
        %637 = vmatprep.subr.bf16.mxu0 0
        %638 = vmatpush1.bf16.msra.mxu0 0
        %639 = vmatprep.subr.bf16.mxu0 0
        %640 = vmatpush1.bf16.msra.mxu0 %v620
        %641 = vmatprep.subr.bf16.mxu0 0
        %642 = vmatpush1.bf16.msra.mxu0 %v619
        %643 = vmatprep.subr.bf16.mxu0 0
        %644 = vmatpush2.bf16.msra.mxu0 0
        %645 = vmatprep.subr.bf16.mxu0 0
        %646 = vmatpush2.bf16.msra.mxu0 0
        %647 = vmatprep.subr.bf16.mxu0 0
        %648 = vmatpush2.bf16.msra.mxu0 0
        %649 = vmatprep.subr.bf16.mxu0 0
        %650 = vmatpush2.bf16.msra.mxu0 0
        %651 = vmatprep.subr.bf16.mxu0 0
        %652 = vmatpush2.bf16.msra.mxu0 0
        %653 = vmatprep.subr.bf16.mxu0 0
        %654 = vmatpush2.bf16.msra.mxu0 0
        %655 = vmatprep.subr.bf16.mxu0 0
        %656 = vmatpush2.bf16.msra.mxu0 0
        %657 = vmatprep.subr.bf16.mxu0 0
        %658 = vmatpush2.bf16.msra.mxu0 0
        %659 = vmatprep.mubr.bf16.mxu0 0
        %660 = vmatmul.mubr.bf16.gmra.mxu0 %v625
        %v661 = vpop.f32.mrf.mxu0
        %v662 = vadd.f32 %v609, %v661
        %v663 = vpop.f32.mrf.mxu0
        %v664 = vpop.f32.mrf.mxu0
        %v665 = vpop.f32.mrf.mxu0
        %666 = vdwg.mxu0
        %v667 = vld [vmem:[%s559] sm:$0xf]
        %v668 = vld [vmem:[%s559 + $0x4] sm:$0xf]
        %v669 = vld [vmem:[%s582] sm:$0xf]
        %v670 = vld [vmem:[%s582 + $0x4] sm:$0xf]
        %v671 = vld [vmem:[%s582 + $0x8] sm:$0xf]
        %v672 = vld [vmem:[%s582 + $0xc] sm:$0xf]
        %v673 = vld [vmem:[%s585] sm:$0x1]
        %v675 = vlaneseq
        %v676 = vshrl.u32 %v675, 7
        %v677 = vsub.s32 0, %v676
        %v678 = vrot.slane %v673, %v677
        %v682 = vunpack.c.l.b16 %v667
        %v683 = vunpack.c.l.b16 %v668
        %v684 = vpack.c.b16 %v683, %v682
        %v689 = vunpack.c.l.b16 %v669
        %v690 = vunpack.c.l.b16 %v670
        %v691 = vunpack.c.l.b16 %v671
        %v692 = vunpack.c.l.b16 %v672
        %v693 = vpack.c.b16 %v690, %v689
        %v694 = vpack.c.b16 %v692, %v691
        %v698 = vsel %vm623, %v684, 0
        %700 = vmatprep.subr.bf16.mxu0 0
        %701 = vmatpush1.bf16.msra.mxu0 0
        %702 = vmatprep.subr.bf16.mxu0 0
        %703 = vmatpush1.bf16.msra.mxu0 0
        %704 = vmatprep.subr.bf16.mxu0 0
        %705 = vmatpush1.bf16.msra.mxu0 0
        %706 = vmatprep.subr.bf16.mxu0 0
        %707 = vmatpush1.bf16.msra.mxu0 0
        %708 = vmatprep.subr.bf16.mxu0 0
        %709 = vmatpush1.bf16.msra.mxu0 0
        %710 = vmatprep.subr.bf16.mxu0 0
        %711 = vmatpush1.bf16.msra.mxu0 0
        %712 = vmatprep.subr.bf16.mxu0 0
        %713 = vmatpush1.bf16.msra.mxu0 %v694
        %714 = vmatprep.subr.bf16.mxu0 0
        %715 = vmatpush1.bf16.msra.mxu0 %v693
        %716 = vmatprep.subr.bf16.mxu0 0
        %717 = vmatpush2.bf16.msra.mxu0 0
        %718 = vmatprep.subr.bf16.mxu0 0
        %719 = vmatpush2.bf16.msra.mxu0 0
        %720 = vmatprep.subr.bf16.mxu0 0
        %721 = vmatpush2.bf16.msra.mxu0 0
        %722 = vmatprep.subr.bf16.mxu0 0
        %723 = vmatpush2.bf16.msra.mxu0 0
        %724 = vmatprep.subr.bf16.mxu0 0
        %725 = vmatpush2.bf16.msra.mxu0 0
        %726 = vmatprep.subr.bf16.mxu0 0
        %727 = vmatpush2.bf16.msra.mxu0 0
        %728 = vmatprep.subr.bf16.mxu0 0
        %729 = vmatpush2.bf16.msra.mxu0 0
        %730 = vmatprep.subr.bf16.mxu0 0
        %731 = vmatpush2.bf16.msra.mxu0 0
        %732 = vmatprep.mubr.bf16.mxu0 0
        %733 = vmatmul.mubr.bf16.gmra.mxu0 %v698
        %v734 = vpop.f32.mrf.mxu0
        %v735 = vadd.f32 %v678, %v734
        %v736 = vpop.f32.mrf.mxu0
        %v737 = vpop.f32.mrf.mxu0
        %v738 = vadd.f32 %v678, %v737
        %v739 = vpop.f32.mrf.mxu0
        %740 = vdwg.mxu0
        %v741 = vld [vmem:[%s565] sm:$0xf]
        %v742 = vld [vmem:[%s565 + $0x4] sm:$0xf]
        %v743 = vld [vmem:[%s590] sm:$0xf]
        %v744 = vld [vmem:[%s590 + $0x4] sm:$0xf]
        %v745 = vld [vmem:[%s590 + $0x8] sm:$0xf]
        %v746 = vld [vmem:[%s590 + $0xc] sm:$0xf]
        %v747 = vld [vmem:[%s593] sm:$0x1]
        %v749 = vlaneseq
        %v750 = vshrl.u32 %v749, 7
        %v751 = vsub.s32 0, %v750
        %v752 = vrot.slane %v747, %v751
        %v756 = vunpack.c.l.b16 %v741
        %v757 = vunpack.c.l.b16 %v742
        %v758 = vpack.c.b16 %v757, %v756
        %v763 = vunpack.c.l.b16 %v743
        %v764 = vunpack.c.l.b16 %v744
        %v765 = vunpack.c.l.b16 %v745
        %v766 = vunpack.c.l.b16 %v746
        %v767 = vpack.c.b16 %v764, %v763
        %v768 = vpack.c.b16 %v766, %v765
        %v772 = vsel %vm623, %v758, 0
        %774 = vmatprep.subr.bf16.mxu0 0
        %775 = vmatpush1.bf16.msra.mxu0 0
        %776 = vmatprep.subr.bf16.mxu0 0
        %777 = vmatpush1.bf16.msra.mxu0 0
        %778 = vmatprep.subr.bf16.mxu0 0
        %779 = vmatpush1.bf16.msra.mxu0 0
        %780 = vmatprep.subr.bf16.mxu0 0
        %781 = vmatpush1.bf16.msra.mxu0 0
        %782 = vmatprep.subr.bf16.mxu0 0
        %783 = vmatpush1.bf16.msra.mxu0 0
        %784 = vmatprep.subr.bf16.mxu0 0
        %785 = vmatpush1.bf16.msra.mxu0 0
        %786 = vmatprep.subr.bf16.mxu0 0
        %787 = vmatpush1.bf16.msra.mxu0 %v768
        %788 = vmatprep.subr.bf16.mxu0 0
        %789 = vmatpush1.bf16.msra.mxu0 %v767
        %790 = vmatprep.subr.bf16.mxu0 0
        %791 = vmatpush2.bf16.msra.mxu0 0
        %792 = vmatprep.subr.bf16.mxu0 0
        %793 = vmatpush2.bf16.msra.mxu0 0
        %794 = vmatprep.subr.bf16.mxu0 0
        %795 = vmatpush2.bf16.msra.mxu0 0
        %796 = vmatprep.subr.bf16.mxu0 0
        %797 = vmatpush2.bf16.msra.mxu0 0
        %798 = vmatprep.subr.bf16.mxu0 0
        %799 = vmatpush2.bf16.msra.mxu0 0
        %800 = vmatprep.subr.bf16.mxu0 0
        %801 = vmatpush2.bf16.msra.mxu0 0
        %802 = vmatprep.subr.bf16.mxu0 0
        %803 = vmatpush2.bf16.msra.mxu0 0
        %804 = vmatprep.subr.bf16.mxu0 0
        %805 = vmatpush2.bf16.msra.mxu0 0
        %806 = vmatprep.mubr.bf16.mxu0 0
        %807 = vmatmul.mubr.bf16.gmra.mxu0 %v772
        %v808 = vpop.f32.mrf.mxu0
        %v809 = vadd.f32 %v752, %v808
        %v810 = vpop.f32.mrf.mxu0
        %v811 = vpop.f32.mrf.mxu0
        %v812 = vadd.f32 %v752, %v811
        %v813 = vpop.f32.mrf.mxu0
        %814 = vdwg.mxu0
        %v815 = vpack.c.bf16 %v662, %v662
        %v816 = vpack.c.bf16 %v738, %v735
        %v817 = vpack.c.bf16 %v812, %v809
        %v818 = vld [vmem:[%s569] sm:$0x1]
        %v819 = vunpack.c.l.bf16 %v818
        %v820 = vmul.f32 %v819, -1e+30
        %v821 = vlaneseq
        %v822 = vshrl.u32 %v821, 7
        %v823 = vsub.s32 0, %v822
        %v824 = vrot.slane %v820, %v823
        %vm825 = vcmask 64512
        %v827 = vsel %vm825, %v815, 0
        %v830 = vsel %vm825, %v816, 0
        %832 = vmatprep.subr.bf16.mxu0 0
        %833 = vmatpush1.bf16.xpose.msra.mxu0 0
        %834 = vmatprep.subr.bf16.mxu0 0
        %835 = vmatpush1.bf16.xpose.msra.mxu0 0
        %836 = vmatprep.subr.bf16.mxu0 0
        %837 = vmatpush1.bf16.xpose.msra.mxu0 0
        %838 = vmatprep.subr.bf16.mxu0 0
        %839 = vmatpush1.bf16.xpose.msra.mxu0 0
        %840 = vmatprep.subr.bf16.mxu0 0
        %841 = vmatpush1.bf16.xpose.msra.mxu0 0
        %842 = vmatprep.subr.bf16.mxu0 0
        %843 = vmatpush1.bf16.xpose.msra.mxu0 0
        %844 = vmatprep.subr.bf16.mxu0 0
        %845 = vmatpush1.bf16.xpose.msra.mxu0 0
        %846 = vmatprep.subr.bf16.mxu0 0
        %847 = vmatpush1.bf16.xpose.msra.mxu0 %v830
        %848 = vmatprep.subr.bf16.mxu0 0
        %849 = vmatpush2.bf16.xpose.msra.mxu0 0
        %850 = vmatprep.subr.bf16.mxu0 0
        %851 = vmatpush2.bf16.xpose.msra.mxu0 0
        %852 = vmatprep.subr.bf16.mxu0 0
        %853 = vmatpush2.bf16.xpose.msra.mxu0 0
        %854 = vmatprep.subr.bf16.mxu0 0
        %855 = vmatpush2.bf16.xpose.msra.mxu0 0
        %856 = vmatprep.subr.bf16.mxu0 0
        %857 = vmatpush2.bf16.xpose.msra.mxu0 0
        %858 = vmatprep.subr.bf16.mxu0 0
        %859 = vmatpush2.bf16.xpose.msra.mxu0 0
        %860 = vmatprep.subr.bf16.mxu0 0
        %861 = vmatpush2.bf16.xpose.msra.mxu0 0
        %862 = vmatprep.subr.bf16.mxu0 0
        %863 = vmatpush2.bf16.xpose.msra.mxu0 0
        %864 = vmatprep.mubr.bf16.mxu0 0
        %865 = vmatmul.mubr.bf16.gmra.mxu0 %v827
        %v866 = vpop.f32.mrf.mxu0
        %v867 = vadd.f32 %v824, %v866
        %v868 = vpop.f32.mrf.mxu0
        %v869 = vpop.f32.mrf.mxu0
        %v870 = vpop.f32.mrf.mxu0
        %871 = vdwg.mxu0
        %vm872 = vcmask 130048
        %v873 = vsel %vm872, %v867, -inf
        %874 = vmax.xlane.f32.xlu0 %v873
        %v875 = vpop.xlane.xlu0 %874
        %v876 = vsub.f32 %v867, %v875
        %v877 = vmul.f32 %v876, 1.442695
        %v878 = vpow.pop %v877
        %v879 = vsel %vm872, %v878, 0.0
        %880 = vadd.xlane.f32.xlu0 %v879
        %v881 = vpop.xlane.xlu0 %880
        %v882 = vpack.c.bf16 %v878, %v878
        %v884 = vsel %vm872, %v882, 0
        %886 = vmatprep.subr.bf16.mxu0 0
        %887 = vmatpush1.bf16.msra.mxu0 0
        %888 = vmatprep.subr.bf16.mxu0 0
        %889 = vmatpush1.bf16.msra.mxu0 0
        %890 = vmatprep.subr.bf16.mxu0 0
        %891 = vmatpush1.bf16.msra.mxu0 0
        %892 = vmatprep.subr.bf16.mxu0 0
        %893 = vmatpush1.bf16.msra.mxu0 0
        %894 = vmatprep.subr.bf16.mxu0 0
        %895 = vmatpush1.bf16.msra.mxu0 0
        %896 = vmatprep.subr.bf16.mxu0 0
        %897 = vmatpush1.bf16.msra.mxu0 0
        %898 = vmatprep.subr.bf16.mxu0 0
        %899 = vmatpush1.bf16.msra.mxu0 0
        %900 = vmatprep.subr.bf16.mxu0 0
        %901 = vmatpush1.bf16.msra.mxu0 %v817
        %902 = vmatprep.subr.bf16.mxu0 0
        %903 = vmatpush2.bf16.msra.mxu0 0
        %904 = vmatprep.subr.bf16.mxu0 0
        %905 = vmatpush2.bf16.msra.mxu0 0
        %906 = vmatprep.subr.bf16.mxu0 0
        %907 = vmatpush2.bf16.msra.mxu0 0
        %908 = vmatprep.subr.bf16.mxu0 0
        %909 = vmatpush2.bf16.msra.mxu0 0
        %910 = vmatprep.subr.bf16.mxu0 0
        %911 = vmatpush2.bf16.msra.mxu0 0
        %912 = vmatprep.subr.bf16.mxu0 0
        %913 = vmatpush2.bf16.msra.mxu0 0
        %914 = vmatprep.subr.bf16.mxu0 0
        %915 = vmatpush2.bf16.msra.mxu0 0
        %916 = vmatprep.subr.bf16.mxu0 0
        %917 = vmatpush2.bf16.msra.mxu0 0
        %918 = vmatprep.mubr.bf16.mxu0 0
        %919 = vmatmul.mubr.bf16.gmra.mxu0 %v884
        %v920 = vpop.f32.mrf.mxu0
        %v921 = vadd.f32 0.0, %v920
        %v922 = vpop.f32.mrf.mxu0
        %v923 = vpop.f32.mrf.mxu0
        %v924 = vpop.f32.mrf.mxu0
        %925 = vdwg.mxu0
        %v926 = vrcp.pop %v881
        %v927 = vmul.f32 %v921, %v926
        %v928 = vpack.c.bf16 %v927, %v927
        %v929 = vld [vmem:[%s597] sm:$0xf]
        %v931 = vsel %vm825, %v928, 0
        %vm933 = vcmask 1043456
        %v935 = vsel %vm933, %v929, 0
        %937 = vmatprep.subr.bf16.mxu0 0
        %938 = vmatpush1.bf16.msra.mxu0 0
        %939 = vmatprep.subr.bf16.mxu0 0
        %940 = vmatpush1.bf16.msra.mxu0 0
        %941 = vmatprep.subr.bf16.mxu0 0
        %942 = vmatpush1.bf16.msra.mxu0 0
        %943 = vmatprep.subr.bf16.mxu0 0
        %944 = vmatpush1.bf16.msra.mxu0 0
        %945 = vmatprep.subr.bf16.mxu0 0
        %946 = vmatpush1.bf16.msra.mxu0 0
        %947 = vmatprep.subr.bf16.mxu0 0
        %948 = vmatpush1.bf16.msra.mxu0 0
        %949 = vmatprep.subr.bf16.mxu0 0
        %950 = vmatpush1.bf16.msra.mxu0 0
        %951 = vmatprep.subr.bf16.mxu0 0
        %952 = vmatpush1.bf16.msra.mxu0 %v935
        %953 = vmatprep.subr.bf16.mxu0 0
        %954 = vmatpush2.bf16.msra.mxu0 0
        %955 = vmatprep.subr.bf16.mxu0 0
        %956 = vmatpush2.bf16.msra.mxu0 0
        %957 = vmatprep.subr.bf16.mxu0 0
        %958 = vmatpush2.bf16.msra.mxu0 0
        %959 = vmatprep.subr.bf16.mxu0 0
        %960 = vmatpush2.bf16.msra.mxu0 0
        %961 = vmatprep.subr.bf16.mxu0 0
        %962 = vmatpush2.bf16.msra.mxu0 0
        %963 = vmatprep.subr.bf16.mxu0 0
        %964 = vmatpush2.bf16.msra.mxu0 0
        %965 = vmatprep.subr.bf16.mxu0 0
        %966 = vmatpush2.bf16.msra.mxu0 0
        %967 = vmatprep.subr.bf16.mxu0 0
        %968 = vmatpush2.bf16.msra.mxu0 0
        %969 = vmatprep.mubr.bf16.mxu0 0
        %970 = vmatmul.mubr.bf16.gmra.mxu0 %v931
        %v971 = vpop.f32.mrf.mxu0
        %v972 = vadd.f32 0.0, %v971
        %v973 = vpop.f32.mrf.mxu0
        %v974 = vpop.f32.mrf.mxu0
        %v975 = vpop.f32.mrf.mxu0
        %976 = vdwg.mxu0
        %p977 = scmp.eq.s32.totalorder %s31, 0
        // Predicated region
        $region69: #{tpu_custom_call.1} parent=67 // pred_check
          %p978 = pneg %p977
        $region70: #{tpu_custom_call.1} parent=67 // pred_check_branch
          %980 = sbr.rel (%p978) target = $region72
        $region71: #{tpu_custom_call.1} parent=67 // pred_region
          %v981 = vld [vmem:[%s11] sm:$0x1]
          %v983 = vlaneseq
          %v984 = vshrl.u32 %v983, 7
          %v985 = vsub.s32 0, %v984
          %v986 = vrot.slane %v981, %v985
          %v988 = vadd.f32 %v972, %v986
          %989 = vst.msk [vmem:[%s550] sm:$0xff] %vm623, %v988
        $region72: #{tpu_custom_call.1} parent=67 // pred_fallthru
          _
        %p990 = scmp.gt.s32.totalorder %s31, 0
        // Predicated region
        $region73: #{tpu_custom_call.1} parent=67 // pred_check
          %p991 = pneg %p990
        $region74: #{tpu_custom_call.1} parent=67 // pred_check_branch
          %993 = sbr.rel (%p991) target = $region76
        $region75: #{tpu_custom_call.1} parent=67 // pred_region
          %v994 = vld [vmem:[%s550] sm:$0xff]
          %v995 = vadd.f32 %v994, %v972
          %996 = vst.msk [vmem:[%s550] sm:$0xff] %vm623, %v995
        $region76: #{tpu_custom_call.1} parent=67 // pred_fallthru
          _
        %s997 = sand.u32 %s353, 1
        %s998 = scalar_lea.sflag [#allocation3], %s997
        %s999 = sand.u32 %s353, 1
        %s1000 = smul.addr %s999, 8
        %s1001 = scalar_lea.vmem [#allocation2], %s1000
        // Predicated region
        $region77: #{tpu_custom_call.1} parent=67 // pred_check
          %p1002 = pneg %p363
        $region78: #{tpu_custom_call.1} parent=67 // pred_check_branch
          %1004 = sbr.rel (%p1002) target = $region80
        $region79: #{tpu_custom_call.1} parent=67 // pred_region
          %s1006 = ssub.s32 128, 128
          %1007 = vsyncadd %s998, %s1006
          %s1008 = smul.addr %s30, 128
          %s1009 = scalar_lea.hbm %s12, %s1008
          %s1011 = sshll.u32 %s1001, 4
          %s1012 = int_to_ptr.vmem [resolvable:$true] %s1011
          %1014 = dma.vmem_to_hbm [thread:$0]  %s1012, 128, %s1009, %s998
        $region80: #{tpu_custom_call.1} parent=67 // pred_fallthru
          _
      $region68: #{tpu_custom_call.1} parent=5 // pred_fallthru
        _
      %p1015 = scmp.le.s32.totalorder 2, %s21
      // Predicated region
      $region81: #{tpu_custom_call.1} parent=5 // pred_check
        %p1016 = pneg %p1015
      $region82: #{tpu_custom_call.1} parent=5 // pred_check_branch
        %1018 = sbr.rel (%p1016) target = $region84
      $region83: #{tpu_custom_call.1} parent=5 // pred_region
        %s1019 = ssub.s32 %s21, 2
        // Predicated region
        $region85: #{tpu_custom_call.1} parent=83 // pred_check
          %p1020 = pneg %p369
        $region86: #{tpu_custom_call.1} parent=83 // pred_check_branch
          %1022 = sbr.rel (%p1020) target = $region88
        $region87: #{tpu_custom_call.1} parent=83 // pred_region
          %s1023 = sand.u32 %s354, 1
          %s1024 = scalar_lea.sflag [#allocation3], %s1023
          %s1025 = sand.u32 %s354, 1
          %s1026 = smul.addr %s1025, 8
          %s1027 = scalar_lea.vmem [#allocation2], %s1026
          %1028 = dma.done %s1024, 128
        $region88: #{tpu_custom_call.1} parent=83 // pred_fallthru
          _
      $region84: #{tpu_custom_call.1} parent=5 // pred_fallthru
        _
    $region6: #{tpu_custom_call.1} parent=1 // loop_footer
      %s25 = sadd.s32 1, %s21
    $region7: #{tpu_custom_call.1} parent=1 // loop_footer_branch
      %20 = sbr.rel target = $region3
    $region8: #{tpu_custom_call.1} parent=1 // loop_exit
      _
    %1029 = vsyncpa [#allocation3], 1
    %s1030 = scalar_lea.sflag [#allocation3], 1
    %1031 = vsyncpa %s1030, 1

</llo_original>
